<compile_context>
chip_gen: v5e
topology: v5e:2x2
jax: 0.10.0
libtpu: 0.0.40
codegen_flags: <defaults>
</compile_context>

<pallas_src>
import functools
import math

import jax
import jax.numpy as jnp
from jax import lax
from jax.experimental import pallas as pl
from jax.experimental.pallas import tpu as pltpu


def _round_up(x, m):
    return ((x + m - 1) // m) * m


def margin_softmax_kernel(lab_ref, inv_e_ref, inv_w_ref, emb_ref, w_ref, out_ref,
                          *, s_times_m, tile_c):
    # Cosine numerator on the MXU: bf16 operands, f32 accumulation.
    acc = jnp.dot(emb_ref[...], w_ref[...], preferred_element_type=jnp.float32)

    # Post-matmul normalization + scale. inv_e already carries the factor s, so
    # this produces the fully scaled cosine s * cos(theta) in two VPU multiplies.
    cos_s = acc * inv_e_ref[...] * inv_w_ref[...]                   # (TB, TC)

    # Additive margin at the (row, label) position. label == -1 can never equal a
    # column index (>= 0), which reproduces the torch.where(label != -1) gate.
    labels = lab_ref[...]                                            # (TB, 1) int32
    jc = pl.program_id(0)                                            # class-tile index
    col = lax.broadcasted_iota(jnp.int32, cos_s.shape, 1) + jc * tile_c
    is_target = labels == col
    out_ref[...] = jnp.where(is_target, cos_s - s_times_m, cos_s)


def margin_softmax_forward(embedding, weight, labels, *, s=64.0, m=0.4,
                           tile_b=None, tile_c=None,
                           vmem_tile_budget=24 * 1024 * 1024):
    """Pallas forward for MarginSoftmaxClassifier.

    embedding: (B, D) float32
    weight:    (D, C) float32   (the nn.Parameter `kernel`: in_features x out_features)
    labels:    (B,)   int       (-1 means "no target for this row")
    returns:   (B, C) float32 scaled margined logits
    """
    B, D = embedding.shape
    D2, C = weight.shape
    assert D == D2

    # ---- hoisted normalization (F.normalize, eps=1e-12); fold *s into the row scale.
    inv_e = s / jnp.maximum(
        jnp.linalg.norm(embedding.astype(jnp.float32), axis=1, keepdims=True), 1e-12)
    inv_w = 1.0 / jnp.maximum(
        jnp.linalg.norm(weight.astype(jnp.float32), axis=0, keepdims=True), 1e-12)

    # ---- stream MXU operands as bf16 (halves W HBM bytes; f32 accumulate in-kernel).
    emb_lp = embedding.astype(jnp.bfloat16)
    w_lp = weight.astype(jnp.bfloat16)

    # ---- tile selection: multiple-of-8 batch tile, multiple-of-128 class tile,
    #      sized against a VMEM budget (double-buffered operand + output tiles).
    if tile_b is None:
        tile_b = min(_round_up(B, 8), 512)
    tile_b = _round_up(tile_b, 8)
    if tile_c is None:
        c_cap = min(_round_up(C, 128), 4096)
        tile_c = 128
        for tc in range(128, c_cap + 1, 128):
            need = 2 * (tile_b * D * 2        # bf16 embedding tile
                        + D * tc * 2          # bf16 weight tile
                        + tile_b * tc * 4     # f32 output tile
                        + tile_b * 4 * 2      # labels + inv_e
                        + tc * 4)             # inv_w
            if need <= vmem_tile_budget:
                tile_c = tc
    tile_c = _round_up(tile_c, 128)

    # ---- pad to tile multiples (zero rows/cols produce 0 logits; sliced off below).
    B_pad = _round_up(B, tile_b)
    C_pad = _round_up(C, tile_c)
    lab = labels.astype(jnp.int32).reshape(B, 1)
    if B_pad != B:
        emb_lp = jnp.pad(emb_lp, ((0, B_pad - B), (0, 0)))
        inv_e = jnp.pad(inv_e, ((0, B_pad - B), (0, 0)))
        lab = jnp.pad(lab, ((0, B_pad - B), (0, 0)), constant_values=-1)
    if C_pad != C:
        w_lp = jnp.pad(w_lp, ((0, 0), (0, C_pad - C)))
        inv_w = jnp.pad(inv_w, ((0, 0), (0, C_pad - C)))

    kernel = functools.partial(
        margin_softmax_kernel, s_times_m=float(s) * float(m), tile_c=tile_c)

    # Grid is (class tiles, batch tiles): the batch axis iterates fastest, so the
    # (D, tile_c) weight block is held in VMEM and W is DMA'd from HBM only once.
    out = pl.pallas_call(
        kernel,
        out_shape=jax.ShapeDtypeStruct((B_pad, C_pad), jnp.float32),
        grid_spec=pltpu.PrefetchScalarGridSpec(
            num_scalar_prefetch=0,
            grid=(C_pad // tile_c, B_pad // tile_b),
            in_specs=[
                pl.BlockSpec((tile_b, 1), lambda jc, ib: (ib, 0)),   # labels
                pl.BlockSpec((tile_b, 1), lambda jc, ib: (ib, 0)),   # s / ||e_row||
                pl.BlockSpec((1, tile_c), lambda jc, ib: (0, jc)),   # 1 / ||w_col||
                pl.BlockSpec((tile_b, D), lambda jc, ib: (ib, 0)),   # embedding (bf16)
                pl.BlockSpec((D, tile_c), lambda jc, ib: (0, jc)),   # weight (bf16)
            ],
            out_specs=pl.BlockSpec((tile_b, tile_c), lambda jc, ib: (ib, jc)),
        ),
        compiler_params=pltpu.CompilerParams(
            dimension_semantics=("parallel", "parallel"),
            vmem_limit_bytes=48 * 1024 * 1024),
    )(lab, inv_e, inv_w, emb_lp, w_lp)

    if B_pad != B or C_pad != C:
        out = out[:B, :C]
    return out


def margin_softmax_reference(embedding, weight, labels, s=64.0, m=0.4):
    e_n = embedding / jnp.maximum(
        jnp.linalg.norm(embedding, axis=1, keepdims=True), 1e-12)
    w_n = weight / jnp.maximum(
        jnp.linalg.norm(weight, axis=0, keepdims=True), 1e-12)
    cos = e_n @ w_n
    onehot = (labels[:, None] == jnp.arange(cos.shape[1])[None, :]) & \
             (labels[:, None] != -1)
    cos = jnp.where(onehot, cos - m, cos)
    return cos * s


if __name__ == "__main__":
    # Small but non-trivial shapes: exercises padding (B, C not tile multiples)
    # and the multi-class-tile path (explicit tile_c=128 -> grid=(2, 2)).
    B, D, C = 10, 32, 200          # batch, in_features, out_features
    s_scale, margin = 64.0, 0.4

    key = jax.random.PRNGKey(0)
    k_emb, k_w, k_lab = jax.random.split(key, 3)

    embedding = jax.random.normal(k_emb, (B, D), dtype=jnp.float32)

    # nn.init.xavier_uniform_ on (in_features, out_features)
    bound = math.sqrt(6.0 / (D + C))
    weight = jax.random.uniform(k_w, (D, C), dtype=jnp.float32,
                                minval=-bound, maxval=bound)

    labels = jax.random.randint(k_lab, (B,), 0, C, dtype=jnp.int32)
    labels = labels.at[0].set(-1)   # exercise the "no target" path

    out = margin_softmax_forward(embedding, weight, labels, s=s_scale, m=margin,
                                 tile_b=8, tile_c=128)
    out = jax.block_until_ready(out)

    ref = margin_softmax_reference(embedding, weight, labels, s=s_scale, m=margin)
    assert out.shape == (B, C) and out.dtype == jnp.float32
    err = float(jnp.max(jnp.abs(out - ref)))
    # bf16 operands bound the cosine error by ~2^-8; at s=64 that is << 0.5.
    assert err < 0.5, f"max abs err {err}"

    print("KERNEL_OK")
</pallas_src>

<mosaic_0001>
module attributes {stable_mosaic.version = 11 : i64} {
  func.func @margin_softmax_kernel(%arg0: i32, %arg1: i32, %arg2: memref<8x1xi32, #tpu.memory_space<vmem>>, %arg3: memref<8x1xf32, #tpu.memory_space<vmem>>, %arg4: memref<1x128xf32, #tpu.memory_space<vmem>>, %arg5: memref<8x32xbf16, #tpu.memory_space<vmem>>, %arg6: memref<32x128xbf16, #tpu.memory_space<vmem>>, %arg7: memref<8x128xf32, #tpu.memory_space<vmem>>) attributes {dimension_semantics = [#tpu.dimension_semantics<parallel>, #tpu.dimension_semantics<parallel>], iteration_bounds = array<i64: 2, 2>, scalar_prefetch = 0 : i64, scratch_operands = 0 : i64, tpu.core_type = #tpu.core_type<tc>, window_params = [{transform_indices = @transform_0, window_bounds = array<i64: 8, 1>}, {transform_indices = @transform_1, window_bounds = array<i64: 8, 1>}, {transform_indices = @transform_2, window_bounds = array<i64: 1, 128>}, {transform_indices = @transform_3, window_bounds = array<i64: 8, 32>}, {transform_indices = @transform_4, window_bounds = array<i64: 32, 128>}, {transform_indices = @transform_5, window_bounds = array<i64: 8, 128>}]} {
    %c0 = arith.constant 0 : index
    %c0_0 = arith.constant 0 : index
    %0 = vector.load %arg5[%c0, %c0_0] : memref<8x32xbf16, #tpu.memory_space<vmem>>, vector<8x32xbf16>
    %c0_1 = arith.constant 0 : index
    %c0_2 = arith.constant 0 : index
    %1 = vector.load %arg6[%c0_1, %c0_2] : memref<32x128xbf16, #tpu.memory_space<vmem>>, vector<32x128xbf16>
    %cst = arith.constant dense<0.000000e+00> : vector<8x128xf32>
    %2 = tpu.matmul %0, %1, %cst {dimension_numbers = #tpu.dot_dimension_numbers<[1], [0], [0], [1], [0, 0, 1, 1], [], []>} : vector<8x32xbf16>, vector<32x128xbf16>, vector<8x128xf32> -> vector<8x128xf32>
    %c0_3 = arith.constant 0 : index
    %c0_4 = arith.constant 0 : index
    %3 = vector.load %arg3[%c0_3, %c0_4] : memref<8x1xf32, #tpu.memory_space<vmem>>, vector<8x1xf32>
    %4 = vector.broadcast %3 : vector<8x1xf32> to vector<8x128xf32>
    %5 = arith.mulf %2, %4 : vector<8x128xf32>
    %c0_5 = arith.constant 0 : index
    %c0_6 = arith.constant 0 : index
    %6 = vector.load %arg4[%c0_5, %c0_6] : memref<1x128xf32, #tpu.memory_space<vmem>>, vector<1x128xf32>
    %7 = vector.broadcast %6 : vector<1x128xf32> to vector<8x128xf32>
    %8 = arith.mulf %5, %7 : vector<8x128xf32>
    %c0_7 = arith.constant 0 : index
    %c0_8 = arith.constant 0 : index
    %9 = vector.load %arg2[%c0_7, %c0_8] : memref<8x1xi32, #tpu.memory_space<vmem>>, vector<8x1xi32>
    %10 = tpu.iota {dimensions = array<i32: 1>} : vector<8x128xi32>
    %c128_i32 = arith.constant 128 : i32
    %11 = arith.muli %arg0, %c128_i32 : i32
    %12 = vector.broadcast %11 : i32 to vector<8x128xi32>
    %13 = arith.addi %10, %12 : vector<8x128xi32>
    %14 = vector.broadcast %9 : vector<8x1xi32> to vector<8x128xi32>
    %15 = arith.cmpi eq, %14, %13 : vector<8x128xi32>
    %cst_9 = arith.constant 2.560000e+01 : f32
    %16 = vector.broadcast %cst_9 : f32 to vector<8x128xf32>
    %17 = arith.subf %8, %16 : vector<8x128xf32>
    %18 = arith.select %15, %17, %8 : vector<8x128xi1>, vector<8x128xf32>
    %c0_10 = arith.constant 0 : index
    %c0_11 = arith.constant 0 : index
    %19 = vector.load %arg7[%c0_10, %c0_11] : memref<8x128xf32, #tpu.memory_space<vmem>>, vector<8x128xf32>
    tpu.vector_store %arg7[%c0_10, %c0_11], %18 {strides = array<i32>} : memref<8x128xf32, #tpu.memory_space<vmem>>, vector<8x128xf32>,
    return
  }
  func.func @transform_0(%arg0: i32, %arg1: i32) -> (i32, i32) {
    %c0_i32 = arith.constant 0 : i32
    %c0_i32_0 = arith.constant 0 : i32
    return %arg1, %c0_i32 : i32, i32
  }
  func.func @transform_1(%arg0: i32, %arg1: i32) -> (i32, i32) {
    %c0_i32 = arith.constant 0 : i32
    %c0_i32_0 = arith.constant 0 : i32
    return %arg1, %c0_i32 : i32, i32
  }
  func.func @transform_2(%arg0: i32, %arg1: i32) -> (i32, i32) {
    %c0_i32 = arith.constant 0 : i32
    %c0_i32_0 = arith.constant 0 : i32
    return %c0_i32, %arg0 : i32, i32
  }
  func.func @transform_3(%arg0: i32, %arg1: i32) -> (i32, i32) {
    %c0_i32 = arith.constant 0 : i32
    %c0_i32_0 = arith.constant 0 : i32
    return %arg1, %c0_i32 : i32, i32
  }
  func.func @transform_4(%arg0: i32, %arg1: i32) -> (i32, i32) {
    %c0_i32 = arith.constant 0 : i32
    %c0_i32_0 = arith.constant 0 : i32
    return %c0_i32, %arg0 : i32, i32
  }
  func.func @transform_5(%arg0: i32, %arg1: i32) -> (i32, i32) {
    %c0_i32 = arith.constant 0 : i32
    return %arg1, %arg0 : i32, i32
  }
}

</mosaic_0001>

<llo_original>
// kernel: tpu_custom_call.1
$region0: #{tpu_custom_call.1}
  #allocation0 [shape = 'u32[]', space=smem, size = 0x4, offset = 0x4, fixed_abs, tag = 'smem constant byte address 0x4 - core index']
  #allocation1 [shape = 'u32[72,128]{1,0:T(1,128)}', space=vmem, size = 0x9000, scoped, tag = 'internal scratch']
  %s0 = inlined_call_operand.vmem [shape: s32[16,1], index: 0, kind: input, shape index: {}]
  %s1 = inlined_call_operand.vmem [shape: f32[16,1], index: 1, kind: input, shape index: {}]
  %s2 = inlined_call_operand.vmem [shape: f32[1,256], index: 2, kind: input, shape index: {}]
  %s3 = inlined_call_operand.hbm [shape: bf16[16,32], index: 3, kind: input, shape index: {}]
  %s4 = inlined_call_operand.vmem [shape: bf16[32,256], index: 4, kind: input, shape index: {}]
  %s5 = inlined_call_operand.hbm [shape: f32[16,256], index: 5, kind: output, shape index: {}]
  %s6 = sld [smem:[#allocation0]]
  $region98: #{tpu_custom_call.1} parent=0
    _
  %s8 = ssub.s32 1, %s6
  %s9 = scalar_select 0, %s8, %s6
  $region1: #{tpu_custom_call.1} parent=0
    #allocation2 [shape = 'u8[4096]{0}', space=vmem, size = 0x1000, scoped, tag = 'input window, operand 3']
    #allocation3 [shape = 's32[2]{0}', space=sflag, size = 0x8, scoped, tag = 'scoped memory for tpu_custom_call.1']
    #allocation4 [shape = 's32[2]{0}', space=sflag, size = 0x8, scoped, tag = 'scoped memory for tpu_custom_call.1']
    #allocation5 [shape = 'u8[16384]{0}', space=vmem, size = 0x4000, scoped, tag = 'input window, operand 4']
    #allocation6 [shape = 'u8[8192]{0}', space=vmem, size = 0x2000, scoped, tag = 'output window, operand 0']
    %10 = vsyncpa [#allocation3], 0
    %s11 = scalar_lea.sflag [#allocation3], 1
    %12 = vsyncpa %s11, 0
    %13 = vsyncpa [#allocation4], 0
    %s14 = scalar_lea.sflag [#allocation4], 1
    %15 = vsyncpa %s14, 0
    loop: start=0, step=1, limit=6
    $region2: #{tpu_custom_call.1} parent=1 // loop_pre_header
      _
    $region3: #{tpu_custom_call.1} parent=1 // loop_header
      %s17 = sphi 0, %s21
      %p18 = scmp.ge.s32.totalorder %s17, 6
      %s24 = sphi 0, %s36
      %s25 = sphi 0, %s32
      %s26 = sphi 0, %s24
      %s27 = sphi 0, %s25
      %s28 = sphi 0, %s26
      %s29 = sphi 0, %s27
      %s39 = sphi 0, %s41
      %s42 = sphi 0, %s39
      %s43 = sphi 0, %s42
      %s59 = sphi 0, %s43
      %s65 = sphi 0, %s67
      %s68 = sphi 0, %s65
      %s69 = sphi 0, %s68
      %s85 = sphi 0, %s69
      %s91 = sphi 0, %s93
      %s94 = sphi 0, %s91
      %s95 = sphi 0, %s94
      %s111 = sphi 0, %s95
      %s117 = sphi 0, %s119
      %s120 = sphi 0, %s117
      %s121 = sphi 0, %s120
      %s137 = sphi 0, %s121
      %s143 = sphi 0, %s145
      %s146 = sphi 0, %s143
      %s147 = sphi 0, %s146
      %s163 = sphi 0, %s147
      %s171 = sphi 0, %s173
      %s174 = sphi 0, %s171
      %s175 = sphi 0, %s174
      %s191 = sphi 0, %s175
    $region4: #{tpu_custom_call.1} parent=1 // loop_header_branch
      %20 = sbr.rel (%p18) target = $region8
    $region5: #{tpu_custom_call.1} parent=1 // loop_body
      %s22 = ssub.s32 %s17, 1
      %s23 = ssub.s32 %s17, 2
      %s30 = sadd.s32 1, %s25
      %p31 = scmp.ge.s32.totalorder %s30, 2
      %s32 = scalar_select %p31, 0, %s30
      %s33 = sadd.s32 1, %s24
      %s34 = scalar_select %p31, %s33, %s24
      %p35 = scmp.ge.s32.totalorder %s34, 2
      %s36 = scalar_select %p35, 0, %s34
      %s37 = ssub.s32 %s25, %s32
      %p38 = scmp.eq.s32.totalorder %s37, 0
      %s40 = sadd.s32 %s39, 1
      %s41 = scalar_select %p38, %s39, %s40
      %p44 = pneg %p38
      %p45 = scmp.eq.s32.totalorder %s17, 3
      %p46 = por %p44, %p45
      %p47 = scmp.ne.s32.totalorder %s39, %s42
      %p48 = scmp.eq.s32.totalorder %s17, 0
      %p49 = por %p47, %p48
      %p50 = scmp.ne.s32.totalorder %s39, %s42
      %p51 = scmp.eq.s32.totalorder %s22, 3
      %p52 = por %p50, %p51
      %p53 = scmp.ne.s32.totalorder %s42, %s43
      %p54 = scmp.eq.s32.totalorder %s22, 0
      %p55 = por %p53, %p54
      %p56 = scmp.ne.s32.totalorder %s42, %s43
      %p57 = scmp.eq.s32.totalorder %s23, 3
      %p58 = por %p56, %p57
      %p60 = scmp.ne.s32.totalorder %s43, %s59
      %p61 = scmp.eq.s32.totalorder %s23, 0
      %p62 = por %p60, %p61
      %s63 = ssub.s32 %s25, %s32
      %p64 = scmp.eq.s32.totalorder %s63, 0
      %s66 = sadd.s32 %s65, 1
      %s67 = scalar_select %p64, %s65, %s66
      %p70 = pneg %p64
      %p71 = scmp.eq.s32.totalorder %s17, 3
      %p72 = por %p70, %p71
      %p73 = scmp.ne.s32.totalorder %s65, %s68
      %p74 = scmp.eq.s32.totalorder %s17, 0
      %p75 = por %p73, %p74
      %p76 = scmp.ne.s32.totalorder %s65, %s68
      %p77 = scmp.eq.s32.totalorder %s22, 3
      %p78 = por %p76, %p77
      %p79 = scmp.ne.s32.totalorder %s68, %s69
      %p80 = scmp.eq.s32.totalorder %s22, 0
      %p81 = por %p79, %p80
      %p82 = scmp.ne.s32.totalorder %s68, %s69
      %p83 = scmp.eq.s32.totalorder %s23, 3
      %p84 = por %p82, %p83
      %p86 = scmp.ne.s32.totalorder %s69, %s85
      %p87 = scmp.eq.s32.totalorder %s23, 0
      %p88 = por %p86, %p87
      %s89 = ssub.s32 %s24, %s36
      %p90 = scmp.eq.s32.totalorder %s89, 0
      %s92 = sadd.s32 %s91, 1
      %s93 = scalar_select %p90, %s91, %s92
      %p96 = pneg %p90
      %p97 = scmp.eq.s32.totalorder %s17, 3
      %p98 = por %p96, %p97
      %p99 = scmp.ne.s32.totalorder %s91, %s94
      %p100 = scmp.eq.s32.totalorder %s17, 0
      %p101 = por %p99, %p100
      %p102 = scmp.ne.s32.totalorder %s91, %s94
      %p103 = scmp.eq.s32.totalorder %s22, 3
      %p104 = por %p102, %p103
      %p105 = scmp.ne.s32.totalorder %s94, %s95
      %p106 = scmp.eq.s32.totalorder %s22, 0
      %p107 = por %p105, %p106
      %p108 = scmp.ne.s32.totalorder %s94, %s95
      %p109 = scmp.eq.s32.totalorder %s23, 3
      %p110 = por %p108, %p109
      %p112 = scmp.ne.s32.totalorder %s95, %s111
      %p113 = scmp.eq.s32.totalorder %s23, 0
      %p114 = por %p112, %p113
      %s115 = ssub.s32 %s25, %s32
      %p116 = scmp.eq.s32.totalorder %s115, 0
      %s118 = sadd.s32 %s117, 1
      %s119 = scalar_select %p116, %s117, %s118
      %p122 = pneg %p116
      %p123 = scmp.eq.s32.totalorder %s17, 3
      %p124 = por %p122, %p123
      %p125 = scmp.ne.s32.totalorder %s117, %s120
      %p126 = scmp.eq.s32.totalorder %s17, 0
      %p127 = por %p125, %p126
      %p128 = scmp.ne.s32.totalorder %s117, %s120
      %p129 = scmp.eq.s32.totalorder %s22, 3
      %p130 = por %p128, %p129
      %p131 = scmp.ne.s32.totalorder %s120, %s121
      %p132 = scmp.eq.s32.totalorder %s22, 0
      %p133 = por %p131, %p132
      %p134 = scmp.ne.s32.totalorder %s120, %s121
      %p135 = scmp.eq.s32.totalorder %s23, 3
      %p136 = por %p134, %p135
      %p138 = scmp.ne.s32.totalorder %s121, %s137
      %p139 = scmp.eq.s32.totalorder %s23, 0
      %p140 = por %p138, %p139
      %s141 = ssub.s32 %s24, %s36
      %p142 = scmp.eq.s32.totalorder %s141, 0
      %s144 = sadd.s32 %s143, 1
      %s145 = scalar_select %p142, %s143, %s144
      %p148 = pneg %p142
      %p149 = scmp.eq.s32.totalorder %s17, 3
      %p150 = por %p148, %p149
      %p151 = scmp.ne.s32.totalorder %s143, %s146
      %p152 = scmp.eq.s32.totalorder %s17, 0
      %p153 = por %p151, %p152
      %p154 = scmp.ne.s32.totalorder %s143, %s146
      %p155 = scmp.eq.s32.totalorder %s22, 3
      %p156 = por %p154, %p155
      %p157 = scmp.ne.s32.totalorder %s146, %s147
      %p158 = scmp.eq.s32.totalorder %s22, 0
      %p159 = por %p157, %p158
      %p160 = scmp.ne.s32.totalorder %s146, %s147
      %p161 = scmp.eq.s32.totalorder %s23, 3
      %p162 = por %p160, %p161
      %p164 = scmp.ne.s32.totalorder %s147, %s163
      %p165 = scmp.eq.s32.totalorder %s23, 0
      %p166 = por %p164, %p165
      %s167 = ssub.s32 %s25, %s32
      %s168 = ssub.s32 %s24, %s36
      %s169 = sor.u32 %s167, %s168
      %p170 = scmp.eq.s32.totalorder %s169, 0
      %s172 = sadd.s32 %s171, 1
      %s173 = scalar_select %p170, %s171, %s172
      %p176 = pneg %p170
      %p177 = scmp.eq.s32.totalorder %s17, 3
      %p178 = por %p176, %p177
      %p179 = scmp.ne.s32.totalorder %s171, %s174
      %p180 = scmp.eq.s32.totalorder %s17, 0
      %p181 = por %p179, %p180
      %p182 = scmp.ne.s32.totalorder %s171, %s174
      %p183 = scmp.eq.s32.totalorder %s22, 3
      %p184 = por %p182, %p183
      %p185 = scmp.ne.s32.totalorder %s174, %s175
      %p186 = scmp.eq.s32.totalorder %s22, 0
      %p187 = por %p185, %p186
      %p188 = scmp.ne.s32.totalorder %s174, %s175
      %p189 = scmp.eq.s32.totalorder %s23, 3
      %p190 = por %p188, %p189
      %p192 = scmp.ne.s32.totalorder %s175, %s191
      %p193 = scmp.eq.s32.totalorder %s23, 0
      %p194 = por %p192, %p193
      %p195 = scmp.le.s32.totalorder 1, %s17
      %p196 = scmp.lt.s32.totalorder %s17, 5
      %p197 = pnand %p195, %p196
      %p198 = pneg %p197
      // Predicated region
      $region9: #{tpu_custom_call.1} parent=5 // pred_check
        _
      $region10: #{tpu_custom_call.1} parent=5 // pred_check_branch
        %200 = sbr.rel (%p197) target = $region12
      $region11: #{tpu_custom_call.1} parent=5 // pred_region
        %s201 = ssub.s32 %s17, 1
      $region12: #{tpu_custom_call.1} parent=5 // pred_fallthru
        _
      %p202 = scmp.lt.s32.totalorder %s17, 4
      // Predicated region
      $region13: #{tpu_custom_call.1} parent=5 // pred_check
        %p203 = pneg %p202
      $region14: #{tpu_custom_call.1} parent=5 // pred_check_branch
        %205 = sbr.rel (%p203) target = $region16
      $region15: #{tpu_custom_call.1} parent=5 // pred_region
        // Predicated region
        $region17: #{tpu_custom_call.1} parent=15 // pred_check
          %p206 = pneg %p49
        $region18: #{tpu_custom_call.1} parent=15 // pred_check_branch
          %208 = sbr.rel (%p206) target = $region20
        $region19: #{tpu_custom_call.1} parent=15 // pred_region
          %p209 = scmp.lt.s32.totalorder %s25, 1
          %s210 = scalar_select %p209, %s25, 1
          %s211 = smul.addr %s210, 8
          %s212 = scalar_lea.vmem %s0, %s211
        $region20: #{tpu_custom_call.1} parent=15 // pred_fallthru
          _
        // Predicated region
        $region21: #{tpu_custom_call.1} parent=15 // pred_check
          %p213 = pneg %p75
        $region22: #{tpu_custom_call.1} parent=15 // pred_check_branch
          %215 = sbr.rel (%p213) target = $region24
        $region23: #{tpu_custom_call.1} parent=15 // pred_region
          %p216 = scmp.lt.s32.totalorder %s25, 1
          %s217 = scalar_select %p216, %s25, 1
          %s218 = smul.addr %s217, 8
          %s219 = scalar_lea.vmem %s1, %s218
        $region24: #{tpu_custom_call.1} parent=15 // pred_fallthru
          _
        // Predicated region
        $region25: #{tpu_custom_call.1} parent=15 // pred_check
          %p220 = pneg %p101
        $region26: #{tpu_custom_call.1} parent=15 // pred_check_branch
          %222 = sbr.rel (%p220) target = $region28
        $region27: #{tpu_custom_call.1} parent=15 // pred_region
          %p223 = scmp.lt.s32.totalorder %s24, 1
          %s224 = scalar_select %p223, %s24, 1
          %s225 = scalar_lea.vmem %s2, %s224
        $region28: #{tpu_custom_call.1} parent=15 // pred_fallthru
          _
        // Predicated region
        $region29: #{tpu_custom_call.1} parent=15 // pred_check
          %p226 = pneg %p127
        $region30: #{tpu_custom_call.1} parent=15 // pred_check_branch
          %228 = sbr.rel (%p226) target = $region32
        $region31: #{tpu_custom_call.1} parent=15 // pred_region
          %s229 = sand.u32 %s117, 1
          %s230 = scalar_lea.sflag [#allocation3], %s229
          %s231 = sand.u32 %s117, 1
          %s232 = smul.addr %s231, 4
          %s233 = scalar_lea.vmem [#allocation2], %s232
          %235 = vsyncadd %s230, 0
          %s236 = smul.addr %s25, 4
          %s237 = scalar_lea.hbm %s3, %s236
          %s239 = sshll.u32 %s237, 4
          %s240 = int_to_ptr.hbm [resolvable:$true] %s239
          %s241 = sshll.u32 %s233, 4
          %s242 = int_to_ptr.vmem [resolvable:$true] %s241
          %244 = dma.hbm_to_vmem [thread:$0]  %s240, 64, %s242, %s230
        $region32: #{tpu_custom_call.1} parent=15 // pred_fallthru
          _
        // Predicated region
        $region33: #{tpu_custom_call.1} parent=15 // pred_check
          %p245 = pneg %p153
        $region34: #{tpu_custom_call.1} parent=15 // pred_check_branch
          %247 = sbr.rel (%p245) target = $region36
        $region35: #{tpu_custom_call.1} parent=15 // pred_region
          %s248 = sand.u32 %s143, 1
          %s249 = sand.u32 %s143, 1
          %s250 = smul.addr %s249, 16
          %s251 = scalar_lea.vmem [#allocation5], %s250
          %s252 = smul.addr %s24, 4
          %s253 = scalar_lea.vmem %s4, %s252
          // Predicated region
          $region37: #{tpu_custom_call.1} parent=35 // pred_check
            _
          $region38: #{tpu_custom_call.1} parent=35 // pred_check_branch
            %255 = sbr.rel (0) target = $region40
          $region39: #{tpu_custom_call.1} parent=35 // pred_region
            // Predicated region
            $region41: #{tpu_custom_call.1} parent=39 // pred_check
              _
            $region42: #{tpu_custom_call.1} parent=39 // pred_check_branch
              %257 = sbr.rel target = $region44
            $region43: #{tpu_custom_call.1} parent=39 // pred_region
              // Predicated region
              $region56: #{tpu_custom_call.1} parent=43 // pred_check
                _
              $region57: #{tpu_custom_call.1} parent=43 // pred_check_branch
                %279 = sbr.rel (0) target = $region59
              $region58: #{tpu_custom_call.1} parent=43 // pred_region
                loop: start=0, step=1, limit=1
                $region60: #{tpu_custom_call.1} parent=58 // loop_pre_header
                  _
                $region61: #{tpu_custom_call.1} parent=58 // loop_header
                  %s281 = sphi 0, %s285
                  %p282 = scmp.ge.s32.totalorder %s281, 1
                  %s286 = sphi %s253, %s253
                  %s287 = sphi %s251, %s251
                $region62: #{tpu_custom_call.1} parent=58 // loop_header_branch
                  %284 = sbr.rel (%p282) target = $region66
                $region63: #{tpu_custom_call.1} parent=58 // loop_body
                  _
                $region64: #{tpu_custom_call.1} parent=58 // loop_footer
                  %s285 = sadd.s32 1, %s281
                $region65: #{tpu_custom_call.1} parent=58 // loop_footer_branch
                  %280 = sbr.rel target = $region61
                $region66: #{tpu_custom_call.1} parent=58 // loop_exit
                  _
                %s289 = ssub.s32 16, 1
                loop: start=0, step=1, limit=1
                $region67: #{tpu_custom_call.1} parent=58 // loop_pre_header
                  _
                $region68: #{tpu_custom_call.1} parent=58 // loop_header
                  %s291 = sphi 0, %s295
                  %p292 = scmp.ge.s32.totalorder %s291, 1
                  %s296 = sphi %s253, %s253
                  %s297 = sphi %s251, %s251
                $region69: #{tpu_custom_call.1} parent=58 // loop_header_branch
                  %294 = sbr.rel (%p292) target = $region73
                $region70: #{tpu_custom_call.1} parent=58 // loop_body
                  %v298 = vld [vmem:[%s296] sm:%s289]
                  %299 = vst [vmem:[%s297] sm:%s289] %v298
                  %v300 = vld [vmem:[%s296 + $0x8] sm:%s289]
                  %301 = vst [vmem:[%s297 + $0x4] sm:%s289] %v300
                  %v302 = vld [vmem:[%s296 + $0x10] sm:%s289]
                  %303 = vst [vmem:[%s297 + $0x8] sm:%s289] %v302
                  %v304 = vld [vmem:[%s296 + $0x18] sm:%s289]
                  %305 = vst [vmem:[%s297 + $0xc] sm:%s289] %v304
                $region71: #{tpu_custom_call.1} parent=58 // loop_footer
                  %s295 = sadd.s32 1, %s291
                $region72: #{tpu_custom_call.1} parent=58 // loop_footer_branch
                  %290 = sbr.rel target = $region68
                $region73: #{tpu_custom_call.1} parent=58 // loop_exit
                  _
              $region59: #{tpu_custom_call.1} parent=43 // pred_fallthru
                _
            $region44: #{tpu_custom_call.1} parent=39 // pred_fallthru
              _
            // Predicated region
            $region45: #{tpu_custom_call.1} parent=39 // pred_check
              _
            $region46: #{tpu_custom_call.1} parent=39 // pred_check_branch
              %259 = sbr.rel (0) target = $region48
            $region47: #{tpu_custom_call.1} parent=39 // pred_region
              %s261 = ssub.s32 16, 1
              loop: start=0, step=1, limit=1
              $region49: #{tpu_custom_call.1} parent=47 // loop_pre_header
                _
              $region50: #{tpu_custom_call.1} parent=47 // loop_header
                %s263 = sphi 0, %s267
                %p264 = scmp.ge.s32.totalorder %s263, 1
                %s268 = sphi %s253, %s253
                %s269 = sphi %s251, %s251
              $region51: #{tpu_custom_call.1} parent=47 // loop_header_branch
                %266 = sbr.rel (%p264) target = $region55
              $region52: #{tpu_custom_call.1} parent=47 // loop_body
                %v270 = vld [vmem:[%s268] sm:%s261]
                %271 = vst [vmem:[%s269] sm:%s261] %v270
                %v272 = vld [vmem:[%s268 + $0x8] sm:%s261]
                %273 = vst [vmem:[%s269 + $0x4] sm:%s261] %v272
                %v274 = vld [vmem:[%s268 + $0x10] sm:%s261]
                %275 = vst [vmem:[%s269 + $0x8] sm:%s261] %v274
                %v276 = vld [vmem:[%s268 + $0x18] sm:%s261]
                %277 = vst [vmem:[%s269 + $0xc] sm:%s261] %v276
              $region53: #{tpu_custom_call.1} parent=47 // loop_footer
                %s267 = sadd.s32 1, %s263
              $region54: #{tpu_custom_call.1} parent=47 // loop_footer_branch
                %262 = sbr.rel target = $region50
              $region55: #{tpu_custom_call.1} parent=47 // loop_exit
                _
            $region48: #{tpu_custom_call.1} parent=39 // pred_fallthru
              _
          $region40: #{tpu_custom_call.1} parent=35 // pred_fallthru
            _
          %306 = vnop
        $region36: #{tpu_custom_call.1} parent=15 // pred_fallthru
          _
      $region16: #{tpu_custom_call.1} parent=5 // pred_fallthru
        _
      %p307 = scmp.le.s32.totalorder 1, %s17
      %p308 = scmp.lt.s32.totalorder %s17, 5
      %p309 = pnand %p307, %p308
      %p310 = pneg %p309
      // Predicated region
      $region74: #{tpu_custom_call.1} parent=5 // pred_check
        _
      $region75: #{tpu_custom_call.1} parent=5 // pred_check_branch
        %312 = sbr.rel (%p309) target = $region77
      $region76: #{tpu_custom_call.1} parent=5 // pred_region
        %s313 = ssub.s32 %s17, 1
        %s314 = sand.u32 %s120, 1
        %s315 = scalar_lea.sflag [#allocation3], %s314
        %s316 = sand.u32 %s120, 1
        %s317 = smul.addr %s316, 4
        %s318 = scalar_lea.vmem [#allocation2], %s317
        // Predicated region
        $region78: #{tpu_custom_call.1} parent=76 // pred_check
          %p319 = pneg %p133
        $region79: #{tpu_custom_call.1} parent=76 // pred_check_branch
          %321 = sbr.rel (%p319) target = $region81
        $region80: #{tpu_custom_call.1} parent=76 // pred_region
          %323 = dma.done %s315, 64
        $region81: #{tpu_custom_call.1} parent=76 // pred_fallthru
          _
        %s324 = sand.u32 %s146, 1
        %s325 = sand.u32 %s146, 1
        %s326 = smul.addr %s325, 16
        %s327 = scalar_lea.vmem [#allocation5], %s326
        // Predicated region
        $region82: #{tpu_custom_call.1} parent=76 // pred_check
          %p328 = pneg %p159
        $region83: #{tpu_custom_call.1} parent=76 // pred_check_branch
          %330 = sbr.rel (%p328) target = $region85
        $region84: #{tpu_custom_call.1} parent=76 // pred_region
          _
        $region85: #{tpu_custom_call.1} parent=76 // pred_fallthru
          _
        %p331 = scmp.lt.s32.totalorder %s27, 1
        %s332 = scalar_select %p331, %s27, 1
        %s333 = smul.addr %s332, 8
        %s334 = scalar_lea.vmem %s0, %s333
        %p335 = pneg %p55
        %p336 = pneg %p52
        %p337 = scmp.lt.s32.totalorder %s27, 1
        %s338 = scalar_select %p337, %s27, 1
        %s339 = smul.addr %s338, 8
        %s340 = scalar_lea.vmem %s1, %s339
        %p341 = pneg %p81
        %p342 = pneg %p78
        %p343 = scmp.lt.s32.totalorder %s26, 1
        %s344 = scalar_select %p343, %s26, 1
        %s345 = scalar_lea.vmem %s2, %s344
        %p346 = pneg %p107
        %p347 = pneg %p104
        %s348 = sand.u32 %s120, 1
        %s349 = scalar_lea.sflag [#allocation3], %s348
        %s350 = sand.u32 %s120, 1
        %s351 = smul.addr %s350, 4
        %s352 = scalar_lea.vmem [#allocation2], %s351
        %p353 = pneg %p133
        %p354 = pneg %p130
        %s355 = sand.u32 %s146, 1
        %s356 = sand.u32 %s146, 1
        %s357 = smul.addr %s356, 16
        %s358 = scalar_lea.vmem [#allocation5], %s357
        %p359 = pneg %p159
        %p360 = pneg %p156
        %p361 = pneg %p187
        %p362 = pneg %p184
        %s363 = sand.u32 %s174, 1
        %s364 = scalar_lea.sflag [#allocation4], %s363
        %s365 = sand.u32 %s174, 1
        %s366 = smul.addr %s365, 8
        %s367 = scalar_lea.vmem [#allocation6], %s366
        %p368 = scmp.lt.s32.totalorder %s27, 1
        %s369 = scalar_select %p368, %s27, 1
        %s370 = smul.addr %s369, 8
        %s371 = scalar_lea.vmem %s0, %s370
        %p372 = scmp.lt.s32.totalorder %s27, 1
        %s373 = scalar_select %p372, %s27, 1
        %s374 = smul.addr %s373, 8
        %s375 = scalar_lea.vmem %s1, %s374
        %p376 = scmp.lt.s32.totalorder %s26, 1
        %s377 = scalar_select %p376, %s26, 1
        %s378 = scalar_lea.vmem %s2, %s377
        %v380 = vld [vmem:[%s318] sm:$0xf]
        %v381 = vld [vmem:[%s327] sm:$0xf]
        %v382 = vld [vmem:[%s327 + $0x4] sm:$0xf]
        %v383 = vld [vmem:[%s327 + $0x8] sm:$0xf]
        %v384 = vld [vmem:[%s327 + $0xc] sm:$0xf]
        %v389 = vunpack.c.l.b16 %v381
        %v390 = vunpack.c.l.b16 %v382
        %v391 = vunpack.c.l.b16 %v383
        %v392 = vunpack.c.l.b16 %v384
        %v393 = vpack.c.b16 %v390, %v389
        %v394 = vpack.c.b16 %v392, %v391
        %vm397 = vcmask 261120
        %v399 = vsel %vm397, %v380, 0
        %401 = vmatpush.bf16.msra.mxu0 0
        %402 = vmatpush.bf16.msra.mxu0 0
        %403 = vmatpush.bf16.msra.mxu0 0
        %404 = vmatpush.bf16.msra.mxu0 0
        %405 = vmatpush.bf16.msra.mxu0 0
        %406 = vmatpush.bf16.msra.mxu0 0
        %407 = vmatpush.bf16.msra.mxu0 %v394
        %408 = vmatpush.bf16.msra.mxu0 %v393
        %409 = vmatmul.bf16.gmra.mxu0 %v399
        %v410 = vpop.f32.mrf.mxu0
        %v411 = vadd.f32 0.0, %v410
        %v412 = vpop.f32.mrf.mxu0
        %413 = vdwg.mxu0
        %v414 = vld [vmem:[%s375] sm:$0xff]
        %416 = vset.pattern.permute.xlu0 0
        %417 = vperm.xlu0 %416, %v414
        %v418 = vpop.permute.xlu0 %417
        %v420 = vmul.f32 %v411, %v418
        %v421 = vld [vmem:[%s378] sm:$0x1]
        %v423 = vperm.slane %v421, 0
        %v425 = vmul.f32 %v420, %v423
        %v426 = vld [vmem:[%s371] sm:$0xff]
        %v427 = vlaneseq
        %v428 = vand.u32 %v427, 127
        %s429 = smul.u32 %s26, 128
        %v430 = vstv %s429
        %v431 = vadd.s32 %v428, %v430
        %432 = vset.pattern.permute.xlu0 0
        %433 = vperm.xlu0 %432, %v426
        %v434 = vpop.permute.xlu0 %433
        %vm435 = vcmp.eq.s32.totalorder %v434, %v431
        %v436 = vsub.f32 %v425, 25.6
        %v437 = vsel %vm435, %v436, %v425
        %438 = vst [vmem:[%s367] sm:$0xff] %v437
        %s439 = sand.u32 %s174, 1
        %s440 = scalar_lea.sflag [#allocation4], %s439
        %s441 = sand.u32 %s174, 1
        %s442 = smul.addr %s441, 8
        %s443 = scalar_lea.vmem [#allocation6], %s442
        // Predicated region
        $region86: #{tpu_custom_call.1} parent=76 // pred_check
          %p444 = pneg %p184
        $region87: #{tpu_custom_call.1} parent=76 // pred_check_branch
          %446 = sbr.rel (%p444) target = $region89
        $region88: #{tpu_custom_call.1} parent=76 // pred_region
          %448 = vsyncadd %s440, 0
          %s449 = smul.addr %s27, 2
          %s450 = sadd.s32 %s26, %s449
          %s451 = smul.addr %s450, 8
          %s452 = scalar_lea.hbm %s5, %s451
          %s454 = sshll.u32 %s443, 4
          %s455 = int_to_ptr.vmem [resolvable:$true] %s454
          %s456 = sshll.u32 %s452, 4
          %s457 = int_to_ptr.hbm [resolvable:$true] %s456
          %459 = dma.vmem_to_hbm [thread:$0]  %s455, 128, %s457, %s440
        $region89: #{tpu_custom_call.1} parent=76 // pred_fallthru
          _
      $region77: #{tpu_custom_call.1} parent=5 // pred_fallthru
        _
      %p460 = scmp.le.s32.totalorder 2, %s17
      // Predicated region
      $region90: #{tpu_custom_call.1} parent=5 // pred_check
        %p461 = pneg %p460
      $region91: #{tpu_custom_call.1} parent=5 // pred_check_branch
        %463 = sbr.rel (%p461) target = $region93
      $region92: #{tpu_custom_call.1} parent=5 // pred_region
        %s464 = ssub.s32 %s17, 2
        // Predicated region
        $region94: #{tpu_custom_call.1} parent=92 // pred_check
          %p465 = pneg %p190
        $region95: #{tpu_custom_call.1} parent=92 // pred_check_branch
          %467 = sbr.rel (%p465) target = $region97
        $region96: #{tpu_custom_call.1} parent=92 // pred_region
          %s468 = sand.u32 %s175, 1
          %s469 = scalar_lea.sflag [#allocation4], %s468
          %s470 = sand.u32 %s175, 1
          %s471 = smul.addr %s470, 8
          %s472 = scalar_lea.vmem [#allocation6], %s471
          %474 = dma.done %s469, 128
        $region97: #{tpu_custom_call.1} parent=92 // pred_fallthru
          _
      $region93: #{tpu_custom_call.1} parent=5 // pred_fallthru
        _
    $region6: #{tpu_custom_call.1} parent=1 // loop_footer
      %s21 = sadd.s32 1, %s17
    $region7: #{tpu_custom_call.1} parent=1 // loop_footer_branch
      %16 = sbr.rel target = $region3
    $region8: #{tpu_custom_call.1} parent=1 // loop_exit
      _
    %475 = vsyncpa [#allocation3], 1
    %s476 = scalar_lea.sflag [#allocation3], 1
    %477 = vsyncpa %s476, 1
    %478 = vsyncpa [#allocation4], 1
    %s479 = scalar_lea.sflag [#allocation4], 1
    %480 = vsyncpa %s479, 1

</llo_original>
